<compile_context>
chip_gen: v5e
topology: v5e:2x2
jax: 0.10.0
libtpu: 0.0.40
codegen_flags: <defaults>
</compile_context>

<pallas_src>
import jax
import jax.numpy as jnp
from jax import lax
from jax.experimental import pallas as pl
from jax.experimental.pallas import tpu as pltpu

LANE = 128
SUBLANE = 8
NPAR = 2           # leading "parallel" grid axis (both TCs on v7x; harmless elsewhere)
INNER_ROWS = 1024  # in-kernel chunk: bounds elementwise temporaries to ~0.5 MiB each


def _round_up(x, m):
    return ((x + m - 1) // m) * m


def _round_down(x, m):
    return (x // m) * m


def _make_mse_kernel(rows, block_rows, inner_rows, n_inner, n_steps):
    """Kernel: accumulate sum((x-t)^2) into an (8,128) f32 partial per core."""

    def kernel(x_ref, t_ref, out_ref, acc_ref):
        step = pl.program_id(1)

        @pl.when(step == 0)
        def _():
            acc_ref[...] = jnp.zeros_like(acc_ref)

        # Logical (unclamped) block id — used to mask rows past the end of the
        # array (partial last block, or an overflow block whose index_map was
        # clamped).  The mask makes out-of-range (undefined) data contribute 0.
        block_id = pl.program_id(0) * n_steps + step
        row_ids = lax.broadcasted_iota(jnp.int32, (inner_rows, LANE), 0)

        def chunk(j, carry):
            start = pl.multiple_of(j * inner_rows, SUBLANE)
            xs = x_ref[pl.ds(start, inner_rows), :].astype(jnp.float32)
            ts = t_ref[pl.ds(start, inner_rows), :].astype(jnp.float32)
            d = xs - ts
            d2 = d * d
            rem = rows - (block_id * block_rows + j * inner_rows)
            d2 = jnp.where(row_ids < rem, d2, 0.0)
            # Sublane-group fold across vregs: pure VPU adds, no XLU, tiny acc.
            acc_ref[...] += d2.reshape(inner_rows // SUBLANE, SUBLANE, LANE).sum(axis=0)
            return carry

        lax.fori_loop(0, n_inner, chunk, 0)

        @pl.when(step == n_steps - 1)
        def _():
            out_ref[...] = acc_ref[...]

    return kernel


def style_loss_forward(x, target, *, max_block_bytes=4 * 1024 * 1024,
                       min_pallas_elements=64 * 1024):
    """Reproduces StyleLoss.forward: returns (input, mse_loss(input, target))."""
    assert x.shape == target.shape, "input/target must match (as in F.mse_loss)"
    total = int(x.size)
    itemsize = x.dtype.itemsize

    # Fallback: tiny tensors (dispatch + per-step overhead dominate) or totals
    # not divisible by 128 (no free lane-dense 2-D view exists; padding/slicing
    # would re-stream the whole tensor through HBM, which is what we avoid).
    # TODO(synk): cover total % 128 != 0 in-kernel via 1-D blocks + masking.
    if total < max(min_pallas_elements, LANE) or total % LANE != 0:
        d = x.astype(jnp.float32) - target.astype(jnp.float32)
        return x, jnp.mean(d * d)

    rows = total // LANE

    # Block sizing: pick n_steps first, then block_rows, so rounding waste is
    # at most 8 rows per step (never a whole block).
    max_block_rows = max(SUBLANE,
                         _round_down(max_block_bytes // (LANE * itemsize), SUBLANE))
    rows_per_core = pl.cdiv(rows, NPAR)
    n_steps_target = max(1, pl.cdiv(rows_per_core, max_block_rows))
    block_rows = min(_round_up(pl.cdiv(rows_per_core, n_steps_target), SUBLANE),
                     max_block_rows)
    if block_rows > INNER_ROWS:
        block_rows = _round_up(block_rows, INNER_ROWS)
        inner_rows = INNER_ROWS
    else:
        inner_rows = block_rows
    n_inner = block_rows // inner_rows

    n_blocks = pl.cdiv(rows, block_rows)
    n_steps = pl.cdiv(n_blocks, NPAR)

    # Free (no-copy) lane-dense 2-D views; operands are never padded or copied.
    x2 = x.reshape(rows, LANE)
    t2 = target.reshape(rows, LANE)

    block_bytes = block_rows * LANE * itemsize
    # Footprint: 2 inputs x 2 pipeline buffers x block + ~3 MiB chunk temporaries
    # + (8,128) accumulator, plus margin.  Stays well inside v7x's 64 MiB VMEM.
    vmem_limit = int(max(16 * 1024 * 1024, 4 * block_bytes + 8 * 1024 * 1024))

    def in_map(p, i):
        # Clamp overflow blocks (grid may overshoot by <= NPAR-1 blocks); the
        # in-kernel mask (built from the *logical* id) zeroes their contribution.
        return (jnp.minimum(p * n_steps + i, n_blocks - 1), 0)

    kernel = _make_mse_kernel(rows, block_rows, inner_rows, n_inner, n_steps)

    partials = pl.pallas_call(
        kernel,
        out_shape=jax.ShapeDtypeStruct((NPAR * SUBLANE, LANE), jnp.float32),
        grid_spec=pltpu.PrefetchScalarGridSpec(
            num_scalar_prefetch=0,
            grid=(NPAR, n_steps),
            in_specs=[
                pl.BlockSpec((block_rows, LANE), in_map),
                pl.BlockSpec((block_rows, LANE), in_map),
            ],
            out_specs=pl.BlockSpec((SUBLANE, LANE), lambda p, i: (p, 0)),
            scratch_shapes=[pltpu.VMEM((SUBLANE, LANE), jnp.float32)],
        ),
        compiler_params=pltpu.CompilerParams(
            dimension_semantics=("parallel", "arbitrary"),
            vmem_limit_bytes=vmem_limit,
        ),
        cost_estimate=pl.CostEstimate(
            flops=5 * total,
            transcendentals=0,
            bytes_accessed=2 * total * itemsize + NPAR * SUBLANE * LANE * 4,
        ),
    )(x2, t2)

    loss = jnp.sum(partials, dtype=jnp.float32) / jnp.float32(total)
    # StyleLoss.forward returns `input` untouched; the loss is a side value
    # (self.loss in the PyTorch module).  We return both.
    return x, loss


if __name__ == "__main__":
    key = jax.random.PRNGKey(0)
    ks = jax.random.split(key, 12)

    def check(xv, tv, *, force_kernel=False, rtol=1e-5, atol=1e-7):
        kwargs = {"min_pallas_elements": 0} if force_kernel else {}
        out, loss = style_loss_forward(xv, tv, **kwargs)
        out = jax.block_until_ready(out)
        loss = jax.block_until_ready(loss)
        ref = jnp.mean((xv.astype(jnp.float32) - tv.astype(jnp.float32)) ** 2)
        assert out.shape == xv.shape and out.dtype == xv.dtype
        assert bool(jnp.all(out == xv)), "forward must return input unchanged"
        assert jnp.allclose(loss, ref, rtol=rtol, atol=atol), (loss, ref)
        return loss

    # Small NCHW case consistent with a conv-feature StyleLoss (forced kernel path).
    N, C, H, W = 2, 4, 16, 16
    x = jax.random.normal(ks[0], (N, C, H, W), dtype=jnp.float32)
    t = jax.random.normal(ks[1], (N, C, H, W), dtype=jnp.float32)
    check(x, t, force_kernel=True)

    # Partial last block: rows=60, block_rows=32 -> exercises in-kernel row masking.
    check(jax.random.normal(ks[2], (1, 3, 40, 64), dtype=jnp.float32),
          jax.random.normal(ks[3], (1, 3, 40, 64), dtype=jnp.float32),
          force_kernel=True)

    # Overflow (clamped) block on the second core of the NPAR axis: rows == one block.
    check(jax.random.normal(ks[4], (2, 4, 8, 16), dtype=jnp.float32),
          jax.random.normal(ks[5], (2, 4, 8, 16), dtype=jnp.float32),
          force_kernel=True)

    # bf16 inputs (cast to f32 inside the kernel, no wire widening).
    check(jax.random.normal(ks[6], (2, 8, 32, 32), dtype=jnp.bfloat16),
          jax.random.normal(ks[7], (2, 8, 32, 32), dtype=jnp.bfloat16),
          force_kernel=True, atol=1e-6)

    # Default path with multi-chunk inner loop (n_inner = 2).
    check(jax.random.normal(ks[8], (2, 16, 128, 128), dtype=jnp.float32),
          jax.random.normal(ks[9], (2, 16, 128, 128), dtype=jnp.float32))

    # Tiny / lane-unfriendly shape -> plain-JAX fallback path.
    check(jax.random.normal(ks[10], (1, 3, 14, 14), dtype=jnp.float32),
          jax.random.normal(ks[11], (1, 3, 14, 14), dtype=jnp.float32))

    print("KERNEL_OK")
</pallas_src>

<mosaic_0001>
module attributes {stable_mosaic.version = 11 : i64} {
  func.func @kernel(%arg0: i32, %arg1: i32, %arg2: memref<8x128xf32, #tpu.memory_space<vmem>>, %arg3: memref<8x128xf32, #tpu.memory_space<vmem>>, %arg4: memref<8x128xf32, #tpu.memory_space<vmem>>, %arg5: memref<8x128xf32, #tpu.memory_space<vmem>>) attributes {dimension_semantics = [#tpu.dimension_semantics<parallel>, #tpu.dimension_semantics<arbitrary>], iteration_bounds = array<i64: 2, 1>, scalar_prefetch = 0 : i64, scratch_operands = 1 : i64, tpu.core_type = #tpu.core_type<tc>, window_params = [{transform_indices = @transform_0, window_bounds = array<i64: 8, 128>}, {transform_indices = @transform_1, window_bounds = array<i64: 8, 128>}, {transform_indices = @transform_2, window_bounds = array<i64: 8, 128>}]} {
    %c0_i32 = arith.constant 0 : i32
    %0 = arith.cmpi eq, %arg1, %c0_i32 : i32
    %1 = arith.extui %0 : i1 to i32
    %c0_i32_0 = arith.constant 0 : i32
    %2 = arith.cmpi ne, %1, %c0_i32_0 : i32
    scf.if %2 {
      %cst_13 = arith.constant 0.000000e+00 : f32
      %30 = vector.broadcast %cst_13 : f32 to vector<8x128xf32>
      %c0_14 = arith.constant 0 : index
      %c0_15 = arith.constant 0 : index
      %31 = vector.load %arg5[%c0_14, %c0_15] : memref<8x128xf32, #tpu.memory_space<vmem>>, vector<8x128xf32>
      tpu.vector_store %arg5[%c0_14, %c0_15], %30 {strides = array<i32>} : memref<8x128xf32, #tpu.memory_space<vmem>>, vector<8x128xf32>,
    } else {
    }
    %c1_i32 = arith.constant 1 : i32
    %3 = arith.muli %arg0, %c1_i32 : i32
    %4 = arith.addi %3, %arg1 : i32
    %5 = tpu.iota {dimensions = array<i32: 0>} : vector<8x128xi32>
    %c0_i32_1 = arith.constant 0 : i32
    %c8_i32 = arith.constant 8 : i32
    %6 = arith.muli %c0_i32_1, %c8_i32 : i32
    %7 = tpu.assume_multiple %6, 8 : i32
    %8 = arith.index_cast %7 : i32 to index
    %c0 = arith.constant 0 : index
    %9 = vector.load %arg2[%8, %c0] : memref<8x128xf32, #tpu.memory_space<vmem>>, vector<8x128xf32>
    %10 = arith.index_cast %7 : i32 to index
    %c0_2 = arith.constant 0 : index
    %11 = vector.load %arg3[%10, %c0_2] : memref<8x128xf32, #tpu.memory_space<vmem>>, vector<8x128xf32>
    %12 = arith.subf %9, %11 : vector<8x128xf32>
    %13 = arith.mulf %12, %12 : vector<8x128xf32>
    %c8_i32_3 = arith.constant 8 : i32
    %14 = arith.muli %4, %c8_i32_3 : i32
    %c8_i32_4 = arith.constant 8 : i32
    %15 = arith.muli %c0_i32_1, %c8_i32_4 : i32
    %16 = arith.addi %14, %15 : i32
    %c16_i32 = arith.constant 16 : i32
    %17 = arith.subi %c16_i32, %16 : i32
    %18 = vector.broadcast %17 : i32 to vector<8x128xi32>
    %19 = arith.cmpi slt, %5, %18 : vector<8x128xi32>
    %cst = arith.constant 0.000000e+00 : f32
    %20 = vector.broadcast %cst : f32 to vector<8x128xf32>
    %21 = arith.select %19, %13, %20 : vector<8x128xi1>, vector<8x128xf32>
    %c0_5 = arith.constant 0 : index
    %c0_6 = arith.constant 0 : index
    %22 = vector.load %arg5[%c0_5, %c0_6] : memref<8x128xf32, #tpu.memory_space<vmem>>, vector<8x128xf32>
    %23 = vector.shape_cast %21 : vector<8x128xf32> to vector<1x8x128xf32>
    %cst_7 = arith.constant dense<0.000000e+00> : vector<8x128xf32>
    %24 = vector.multi_reduction <add>, %23, %cst_7 [0] : vector<1x8x128xf32> to vector<8x128xf32>
    %25 = arith.addf %22, %24 : vector<8x128xf32>
    %c0_8 = arith.constant 0 : index
    %c0_9 = arith.constant 0 : index
    %26 = vector.load %arg5[%c0_8, %c0_9] : memref<8x128xf32, #tpu.memory_space<vmem>>, vector<8x128xf32>
    tpu.vector_store %arg5[%c0_8, %c0_9], %25 {strides = array<i32>} : memref<8x128xf32, #tpu.memory_space<vmem>>, vector<8x128xf32>,
    %c1_i32_10 = arith.constant 1 : i32
    %c0_i32_11 = arith.constant 0 : i32
    %27 = arith.cmpi eq, %arg1, %c0_i32_11 : i32
    %28 = arith.extui %27 : i1 to i32
    %c0_i32_12 = arith.constant 0 : i32
    %29 = arith.cmpi ne, %28, %c0_i32_12 : i32
    scf.if %29 {
      %c0_13 = arith.constant 0 : index
      %c0_14 = arith.constant 0 : index
      %30 = vector.load %arg5[%c0_13, %c0_14] : memref<8x128xf32, #tpu.memory_space<vmem>>, vector<8x128xf32>
      %c0_15 = arith.constant 0 : index
      %c0_16 = arith.constant 0 : index
      %31 = vector.load %arg4[%c0_15, %c0_16] : memref<8x128xf32, #tpu.memory_space<vmem>>, vector<8x128xf32>
      tpu.vector_store %arg4[%c0_15, %c0_16], %30 {strides = array<i32>} : memref<8x128xf32, #tpu.memory_space<vmem>>, vector<8x128xf32>,
    } else {
    }
    return
  }
  func.func @transform_0(%arg0: i32, %arg1: i32) -> (i32, i32) {
    %c1_i32 = arith.constant 1 : i32
    %0 = arith.muli %arg0, %c1_i32 : i32
    %1 = arith.addi %0, %arg1 : i32
    %c1_i32_0 = arith.constant 1 : i32
    %2 = arith.minsi %1, %c1_i32_0 : i32
    %c0_i32 = arith.constant 0 : i32
    %c0_i32_1 = arith.constant 0 : i32
    return %2, %c0_i32 : i32, i32
  }
  func.func @transform_1(%arg0: i32, %arg1: i32) -> (i32, i32) {
    %c1_i32 = arith.constant 1 : i32
    %0 = arith.muli %arg0, %c1_i32 : i32
    %1 = arith.addi %0, %arg1 : i32
    %c1_i32_0 = arith.constant 1 : i32
    %2 = arith.minsi %1, %c1_i32_0 : i32
    %c0_i32 = arith.constant 0 : i32
    %c0_i32_1 = arith.constant 0 : i32
    return %2, %c0_i32 : i32, i32
  }
  func.func @transform_2(%arg0: i32, %arg1: i32) -> (i32, i32) {
    %c0_i32 = arith.constant 0 : i32
    %c0_i32_0 = arith.constant 0 : i32
    return %arg0, %c0_i32 : i32, i32
  }
}

</mosaic_0001>

<llo_original>
// kernel: tpu_custom_call.1
$region0: #{tpu_custom_call.1}
  #allocation0 [shape = 'u32[]', space=smem, size = 0x4, offset = 0x4, fixed_abs, tag = 'smem constant byte address 0x4 - core index']
  #allocation1 [shape = 'u32[72,128]{1,0:T(1,128)}', space=vmem, size = 0x9000, scoped, tag = 'internal scratch']
  #allocation2 [shape = 'f32[8,128]{1,0:T(8,128)}', space=vmem, size = 0x1000, scoped, tag = 'scratch operand']
  %s0 = inlined_call_operand.hbm [shape: f32[16,128], index: 0, kind: input, shape index: {}]
  %s1 = inlined_call_operand.hbm [shape: f32[16,128], index: 1, kind: input, shape index: {}]
  %s2 = inlined_call_operand.hbm [shape: f32[16,128], index: 2, kind: output, shape index: {}]
  %s3 = sld [smem:[#allocation0]]
  $region57: #{tpu_custom_call.1} parent=0
    _
  %s5 = ssub.s32 1, %s3
  %s6 = scalar_select 0, %s5, %s3
  $region1: #{tpu_custom_call.1} parent=0
    #allocation3 [shape = 'u8[8192]{0}', space=vmem, size = 0x2000, scoped, tag = 'input window, operand 0']
    #allocation4 [shape = 's32[2]{0}', space=sflag, size = 0x8, scoped, tag = 'scoped memory for tpu_custom_call.1']
    #allocation5 [shape = 's32[2]{0}', space=sflag, size = 0x8, scoped, tag = 'scoped memory for tpu_custom_call.1']
    #allocation6 [shape = 'u8[8192]{0}', space=vmem, size = 0x2000, scoped, tag = 'input window, operand 1']
    #allocation7 [shape = 's32[2]{0}', space=sflag, size = 0x8, scoped, tag = 'scoped memory for tpu_custom_call.1']
    #allocation8 [shape = 'u8[8192]{0}', space=vmem, size = 0x2000, scoped, tag = 'output window, operand 0']
    %7 = vsyncpa [#allocation4], 0
    %s8 = scalar_lea.sflag [#allocation4], 1
    %9 = vsyncpa %s8, 0
    %10 = vsyncpa [#allocation7], 0
    %s11 = scalar_lea.sflag [#allocation7], 1
    %12 = vsyncpa %s11, 0
    %13 = vsyncpa [#allocation5], 0
    %s14 = scalar_lea.sflag [#allocation5], 1
    %15 = vsyncpa %s14, 0
    loop: start=0, step=1, limit=4
    $region2: #{tpu_custom_call.1} parent=1 // loop_pre_header
      _
    $region3: #{tpu_custom_call.1} parent=1 // loop_header
      %s17 = sphi 0, %s21
      %p18 = scmp.ge.s32.totalorder %s17, 4
      %s24 = sphi 0, %s36
      %s25 = sphi 0, %s32
      %s26 = sphi 0, %s24
      %s27 = sphi 0, %s25
      %s28 = sphi 0, %s26
      %s29 = sphi 0, %s27
      %s45 = sphi 0, %s47
      %s48 = sphi 0, %s45
      %s49 = sphi 0, %s48
      %s65 = sphi 0, %s49
      %s77 = sphi 0, %s79
      %s80 = sphi 0, %s77
      %s81 = sphi 0, %s80
      %s97 = sphi 0, %s81
      %s103 = sphi 0, %s105
      %s106 = sphi 0, %s103
      %s107 = sphi 0, %s106
      %s123 = sphi 0, %s107
    $region4: #{tpu_custom_call.1} parent=1 // loop_header_branch
      %20 = sbr.rel (%p18) target = $region8
    $region5: #{tpu_custom_call.1} parent=1 // loop_body
      %s22 = ssub.s32 %s17, 1
      %s23 = ssub.s32 %s17, 2
      %s30 = sadd.s32 1, %s25
      %p31 = scmp.ge.s32.totalorder %s30, 1
      %s32 = scalar_select %p31, 0, %s30
      %s33 = sadd.s32 1, %s24
      %s34 = scalar_select %p31, %s33, %s24
      %p35 = scmp.ge.s32.totalorder %s34, 2
      %s36 = scalar_select %p35, 0, %s34
      %s37 = sadd.s32 %s24, %s25
      %p38 = scmp.lt.s32.totalorder %s37, 1
      %s39 = scalar_select %p38, %s37, 1
      %s40 = sadd.s32 %s36, %s32
      %p41 = scmp.lt.s32.totalorder %s40, 1
      %s42 = scalar_select %p41, %s40, 1
      %s43 = ssub.s32 %s39, %s42
      %p44 = scmp.eq.s32.totalorder %s43, 0
      %s46 = sadd.s32 %s45, 1
      %s47 = scalar_select %p44, %s45, %s46
      %p50 = pneg %p44
      %p51 = scmp.eq.s32.totalorder %s17, 1
      %p52 = por %p50, %p51
      %p53 = scmp.ne.s32.totalorder %s45, %s48
      %p54 = scmp.eq.s32.totalorder %s17, 0
      %p55 = por %p53, %p54
      %p56 = scmp.ne.s32.totalorder %s45, %s48
      %p57 = scmp.eq.s32.totalorder %s22, 1
      %p58 = por %p56, %p57
      %p59 = scmp.ne.s32.totalorder %s48, %s49
      %p60 = scmp.eq.s32.totalorder %s22, 0
      %p61 = por %p59, %p60
      %p62 = scmp.ne.s32.totalorder %s48, %s49
      %p63 = scmp.eq.s32.totalorder %s23, 1
      %p64 = por %p62, %p63
      %p66 = scmp.ne.s32.totalorder %s49, %s65
      %p67 = scmp.eq.s32.totalorder %s23, 0
      %p68 = por %p66, %p67
      %s69 = sadd.s32 %s24, %s25
      %p70 = scmp.lt.s32.totalorder %s69, 1
      %s71 = scalar_select %p70, %s69, 1
      %s72 = sadd.s32 %s36, %s32
      %p73 = scmp.lt.s32.totalorder %s72, 1
      %s74 = scalar_select %p73, %s72, 1
      %s75 = ssub.s32 %s71, %s74
      %p76 = scmp.eq.s32.totalorder %s75, 0
      %s78 = sadd.s32 %s77, 1
      %s79 = scalar_select %p76, %s77, %s78
      %p82 = pneg %p76
      %p83 = scmp.eq.s32.totalorder %s17, 1
      %p84 = por %p82, %p83
      %p85 = scmp.ne.s32.totalorder %s77, %s80
      %p86 = scmp.eq.s32.totalorder %s17, 0
      %p87 = por %p85, %p86
      %p88 = scmp.ne.s32.totalorder %s77, %s80
      %p89 = scmp.eq.s32.totalorder %s22, 1
      %p90 = por %p88, %p89
      %p91 = scmp.ne.s32.totalorder %s80, %s81
      %p92 = scmp.eq.s32.totalorder %s22, 0
      %p93 = por %p91, %p92
      %p94 = scmp.ne.s32.totalorder %s80, %s81
      %p95 = scmp.eq.s32.totalorder %s23, 1
      %p96 = por %p94, %p95
      %p98 = scmp.ne.s32.totalorder %s81, %s97
      %p99 = scmp.eq.s32.totalorder %s23, 0
      %p100 = por %p98, %p99
      %s101 = ssub.s32 %s24, %s36
      %p102 = scmp.eq.s32.totalorder %s101, 0
      %s104 = sadd.s32 %s103, 1
      %s105 = scalar_select %p102, %s103, %s104
      %p108 = pneg %p102
      %p109 = scmp.eq.s32.totalorder %s17, 1
      %p110 = por %p108, %p109
      %p111 = scmp.ne.s32.totalorder %s103, %s106
      %p112 = scmp.eq.s32.totalorder %s17, 0
      %p113 = por %p111, %p112
      %p114 = scmp.ne.s32.totalorder %s103, %s106
      %p115 = scmp.eq.s32.totalorder %s22, 1
      %p116 = por %p114, %p115
      %p117 = scmp.ne.s32.totalorder %s106, %s107
      %p118 = scmp.eq.s32.totalorder %s22, 0
      %p119 = por %p117, %p118
      %p120 = scmp.ne.s32.totalorder %s106, %s107
      %p121 = scmp.eq.s32.totalorder %s23, 1
      %p122 = por %p120, %p121
      %p124 = scmp.ne.s32.totalorder %s107, %s123
      %p125 = scmp.eq.s32.totalorder %s23, 0
      %p126 = por %p124, %p125
      %p127 = scmp.le.s32.totalorder 1, %s17
      %p128 = scmp.lt.s32.totalorder %s17, 3
      %p129 = pnand %p127, %p128
      %p130 = pneg %p129
      // Predicated region
      $region9: #{tpu_custom_call.1} parent=5 // pred_check
        _
      $region10: #{tpu_custom_call.1} parent=5 // pred_check_branch
        %132 = sbr.rel (%p129) target = $region12
      $region11: #{tpu_custom_call.1} parent=5 // pred_region
        %s133 = ssub.s32 %s17, 1
      $region12: #{tpu_custom_call.1} parent=5 // pred_fallthru
        _
      %p134 = scmp.lt.s32.totalorder %s17, 2
      // Predicated region
      $region13: #{tpu_custom_call.1} parent=5 // pred_check
        %p135 = pneg %p134
      $region14: #{tpu_custom_call.1} parent=5 // pred_check_branch
        %137 = sbr.rel (%p135) target = $region16
      $region15: #{tpu_custom_call.1} parent=5 // pred_region
        // Predicated region
        $region17: #{tpu_custom_call.1} parent=15 // pred_check
          %p138 = pneg %p55
        $region18: #{tpu_custom_call.1} parent=15 // pred_check_branch
          %140 = sbr.rel (%p138) target = $region20
        $region19: #{tpu_custom_call.1} parent=15 // pred_region
          %s141 = sand.u32 %s45, 1
          %s142 = scalar_lea.sflag [#allocation4], %s141
          %s143 = sand.u32 %s45, 1
          %s144 = smul.addr %s143, 8
          %s145 = scalar_lea.vmem [#allocation3], %s144
          %s146 = sadd.s32 %s24, %s25
          %p147 = scmp.lt.s32.totalorder %s146, 1
          %s148 = scalar_select %p147, %s146, 1
          %150 = vsyncadd %s142, 0
          %s151 = smul.addr %s148, 8
          %s152 = scalar_lea.hbm %s0, %s151
          %s154 = sshll.u32 %s152, 4
          %s155 = int_to_ptr.hbm [resolvable:$true] %s154
          %s156 = sshll.u32 %s145, 4
          %s157 = int_to_ptr.vmem [resolvable:$true] %s156
          %159 = dma.hbm_to_vmem [thread:$0]  %s155, 128, %s157, %s142
        $region20: #{tpu_custom_call.1} parent=15 // pred_fallthru
          _
        // Predicated region
        $region21: #{tpu_custom_call.1} parent=15 // pred_check
          %p160 = pneg %p87
        $region22: #{tpu_custom_call.1} parent=15 // pred_check_branch
          %162 = sbr.rel (%p160) target = $region24
        $region23: #{tpu_custom_call.1} parent=15 // pred_region
          %s163 = sand.u32 %s77, 1
          %s164 = scalar_lea.sflag [#allocation7], %s163
          %s165 = sand.u32 %s77, 1
          %s166 = smul.addr %s165, 8
          %s167 = scalar_lea.vmem [#allocation6], %s166
          %s168 = sadd.s32 %s24, %s25
          %p169 = scmp.lt.s32.totalorder %s168, 1
          %s170 = scalar_select %p169, %s168, 1
          %172 = vsyncadd %s164, 0
          %s173 = smul.addr %s170, 8
          %s174 = scalar_lea.hbm %s1, %s173
          %s176 = sshll.u32 %s174, 4
          %s177 = int_to_ptr.hbm [resolvable:$true] %s176
          %s178 = sshll.u32 %s167, 4
          %s179 = int_to_ptr.vmem [resolvable:$true] %s178
          %181 = dma.hbm_to_vmem [thread:$0]  %s177, 128, %s179, %s164
        $region24: #{tpu_custom_call.1} parent=15 // pred_fallthru
          _
      $region16: #{tpu_custom_call.1} parent=5 // pred_fallthru
        _
      %p182 = scmp.le.s32.totalorder 1, %s17
      %p183 = scmp.lt.s32.totalorder %s17, 3
      %p184 = pnand %p182, %p183
      %p185 = pneg %p184
      // Predicated region
      $region25: #{tpu_custom_call.1} parent=5 // pred_check
        _
      $region26: #{tpu_custom_call.1} parent=5 // pred_check_branch
        %187 = sbr.rel (%p184) target = $region28
      $region27: #{tpu_custom_call.1} parent=5 // pred_region
        %s188 = ssub.s32 %s17, 1
        %s189 = sand.u32 %s48, 1
        %s190 = scalar_lea.sflag [#allocation4], %s189
        %s191 = sand.u32 %s48, 1
        %s192 = smul.addr %s191, 8
        %s193 = scalar_lea.vmem [#allocation3], %s192
        // Predicated region
        $region29: #{tpu_custom_call.1} parent=27 // pred_check
          %p194 = pneg %p61
        $region30: #{tpu_custom_call.1} parent=27 // pred_check_branch
          %196 = sbr.rel (%p194) target = $region32
        $region31: #{tpu_custom_call.1} parent=27 // pred_region
          %198 = dma.done %s190, 128
        $region32: #{tpu_custom_call.1} parent=27 // pred_fallthru
          _
        %s199 = sand.u32 %s80, 1
        %s200 = scalar_lea.sflag [#allocation7], %s199
        %s201 = sand.u32 %s80, 1
        %s202 = smul.addr %s201, 8
        %s203 = scalar_lea.vmem [#allocation6], %s202
        // Predicated region
        $region33: #{tpu_custom_call.1} parent=27 // pred_check
          %p204 = pneg %p93
        $region34: #{tpu_custom_call.1} parent=27 // pred_check_branch
          %206 = sbr.rel (%p204) target = $region36
        $region35: #{tpu_custom_call.1} parent=27 // pred_region
          %208 = dma.done %s200, 128
        $region36: #{tpu_custom_call.1} parent=27 // pred_fallthru
          _
        %s209 = sand.u32 %s48, 1
        %s210 = scalar_lea.sflag [#allocation4], %s209
        %s211 = sand.u32 %s48, 1
        %s212 = smul.addr %s211, 8
        %s213 = scalar_lea.vmem [#allocation3], %s212
        %p214 = pneg %p61
        %p215 = pneg %p58
        %s216 = sand.u32 %s80, 1
        %s217 = scalar_lea.sflag [#allocation7], %s216
        %s218 = sand.u32 %s80, 1
        %s219 = smul.addr %s218, 8
        %s220 = scalar_lea.vmem [#allocation6], %s219
        %p221 = pneg %p93
        %p222 = pneg %p90
        %p223 = pneg %p119
        %p224 = pneg %p116
        %s225 = sand.u32 %s106, 1
        %s226 = scalar_lea.sflag [#allocation5], %s225
        %s227 = sand.u32 %s106, 1
        %s228 = smul.addr %s227, 8
        %s229 = scalar_lea.vmem [#allocation8], %s228
        %s230 = sadd.s32 %s26, %s27
        %p231 = scmp.lt.s32.totalorder %s230, 1
        %s232 = scalar_select %p231, %s230, 1
        %s233 = sadd.s32 %s26, %s27
        %p234 = scmp.lt.s32.totalorder %s233, 1
        %s235 = scalar_select %p234, %s233, 1
        %p236 = scmp.eq.s32.totalorder %s27, 0
        // Predicated region
        $region37: #{tpu_custom_call.1} parent=27 // pred_check
          %p237 = pneg %p236
        $region38: #{tpu_custom_call.1} parent=27 // pred_check_branch
          %239 = sbr.rel (%p237) target = $region40
        $region39: #{tpu_custom_call.1} parent=27 // pred_region
          %240 = vst [vmem:[#allocation2] sm:$0xff] 0.0
        $region40: #{tpu_custom_call.1} parent=27 // pred_fallthru
          _
        %s241 = sadd.s32 %s26, %s27
        %v242 = vlaneseq
        %v243 = vshrl.u32 %v242, 7
        %v244 = vld [vmem:[%s193] sm:$0xff]
        %v245 = vld [vmem:[%s203] sm:$0xff]
        %v246 = vsub.f32 %v244, %v245
        %v247 = vmul.f32 %v246, %v246
        %s248 = smul.u32 %s241, 8
        %s249 = ssub.s32 16, %s248
        %v250 = vstv %s249
        %vm251 = vcmp.lt.s32.totalorder %v243, %v250
        %v252 = vsel %vm251, %v247, 0.0
        %v253 = vld [vmem:[#allocation2] sm:$0xff]
        %v254 = vadd.f32 %v252, 0.0
        %v255 = vadd.f32 %v253, %v254
        %256 = vst [vmem:[#allocation2] sm:$0xff] %v255
        // Predicated region
        $region41: #{tpu_custom_call.1} parent=27 // pred_check
          %p257 = pneg %p236
        $region42: #{tpu_custom_call.1} parent=27 // pred_check_branch
          %259 = sbr.rel (%p257) target = $region44
        $region43: #{tpu_custom_call.1} parent=27 // pred_region
          %v260 = vld [vmem:[#allocation2] sm:$0xff]
          %261 = vst [vmem:[%s229] sm:$0xff] %v260
        $region44: #{tpu_custom_call.1} parent=27 // pred_fallthru
          _
        %s262 = sand.u32 %s106, 1
        %s263 = scalar_lea.sflag [#allocation5], %s262
        %s264 = sand.u32 %s106, 1
        %s265 = smul.addr %s264, 8
        %s266 = scalar_lea.vmem [#allocation8], %s265
        // Predicated region
        $region45: #{tpu_custom_call.1} parent=27 // pred_check
          %p267 = pneg %p116
        $region46: #{tpu_custom_call.1} parent=27 // pred_check_branch
          %269 = sbr.rel (%p267) target = $region48
        $region47: #{tpu_custom_call.1} parent=27 // pred_region
          %271 = vsyncadd %s263, 0
          %s272 = smul.addr %s26, 8
          %s273 = scalar_lea.hbm %s2, %s272
          %s275 = sshll.u32 %s266, 4
          %s276 = int_to_ptr.vmem [resolvable:$true] %s275
          %s277 = sshll.u32 %s273, 4
          %s278 = int_to_ptr.hbm [resolvable:$true] %s277
          %280 = dma.vmem_to_hbm [thread:$0]  %s276, 128, %s278, %s263
        $region48: #{tpu_custom_call.1} parent=27 // pred_fallthru
          _
      $region28: #{tpu_custom_call.1} parent=5 // pred_fallthru
        _
      %p281 = scmp.le.s32.totalorder 2, %s17
      // Predicated region
      $region49: #{tpu_custom_call.1} parent=5 // pred_check
        %p282 = pneg %p281
      $region50: #{tpu_custom_call.1} parent=5 // pred_check_branch
        %284 = sbr.rel (%p282) target = $region52
      $region51: #{tpu_custom_call.1} parent=5 // pred_region
        %s285 = ssub.s32 %s17, 2
        // Predicated region
        $region53: #{tpu_custom_call.1} parent=51 // pred_check
          %p286 = pneg %p122
        $region54: #{tpu_custom_call.1} parent=51 // pred_check_branch
          %288 = sbr.rel (%p286) target = $region56
        $region55: #{tpu_custom_call.1} parent=51 // pred_region
          %s289 = sand.u32 %s107, 1
          %s290 = scalar_lea.sflag [#allocation5], %s289
          %s291 = sand.u32 %s107, 1
          %s292 = smul.addr %s291, 8
          %s293 = scalar_lea.vmem [#allocation8], %s292
          %295 = dma.done %s290, 128
        $region56: #{tpu_custom_call.1} parent=51 // pred_fallthru
          _
      $region52: #{tpu_custom_call.1} parent=5 // pred_fallthru
        _
    $region6: #{tpu_custom_call.1} parent=1 // loop_footer
      %s21 = sadd.s32 1, %s17
    $region7: #{tpu_custom_call.1} parent=1 // loop_footer_branch
      %16 = sbr.rel target = $region3
    $region8: #{tpu_custom_call.1} parent=1 // loop_exit
      _
    %296 = vsyncpa [#allocation4], 1
    %s297 = scalar_lea.sflag [#allocation4], 1
    %298 = vsyncpa %s297, 1
    %299 = vsyncpa [#allocation7], 1
    %s300 = scalar_lea.sflag [#allocation7], 1
    %301 = vsyncpa %s300, 1
    %302 = vsyncpa [#allocation5], 1
    %s303 = scalar_lea.sflag [#allocation5], 1
    %304 = vsyncpa %s303, 1

</llo_original>
